<compile_context>
chip_gen: v5e
topology: v5e:2x2
jax: 0.10.0
libtpu: 0.0.40
codegen_flags: <defaults>
</compile_context>

<pallas_src>
import math

import jax
import jax.numpy as jnp
from jax.experimental import pallas as pl
from jax.experimental.pallas import tpu as pltpu


def _trunc_kernel(x_ref, o_ref):
    # Elementwise truncation toward zero on the current VMEM tile (pure VPU).
    o_ref[...] = jnp.trunc(x_ref[...])


def _sublane_pack(dtype):
    """Native sublane packing: 8 rows for 32-bit, 16 for 16-bit, 32 for 8-bit."""
    size = jnp.dtype(dtype).itemsize
    if size >= 4:
        return 8
    if size == 2:
        return 16
    return 32


def _pack_shape(total, pack):
    """Pick a (rows, lanes) repack of `total` elements that fills vregs.

    Prefers lanes as wide as possible (lane-dense stores, one contiguous DMA
    per row-tile) while keeping rows a multiple of the dtype's sublane packing.
    Returns None if no multiple of 128 divides `total`.
    """
    for lane in (2048, 1024, 512, 256, 128):
        if total % lane == 0 and (total // lane) % pack == 0:
            return total // lane, lane
    for lane in (2048, 1024, 512, 256, 128):
        if total % lane == 0:
            return total // lane, lane
    return None


def _is_older_gen():
    """True for v5e/v4 (smaller scoped-VMEM defaults, slower HBM): cap tiles at 512 rows."""
    try:
        kind = jax.devices()[0].device_kind.lower()
    except Exception:
        return False
    return ("v5" in kind) or ("v4" in kind)


def _vmem_limit_bytes():
    # v5e: 512-row tiles -> ~16 MiB of double-buffered in+out; 32 MiB is plenty
    # (default scoped 16 MiB would not fit with headroom).
    # v6e/v7x: 1024-row tiles -> ~32 MiB of buffers; 40 MiB stays well under
    # v7x's 64 MiB physical VMEM.
    return (32 << 20) if _is_older_gen() else (40 << 20)


def _choose_tm(rows, lanes, itemsize, pack):
    """Row-tile size: per-generation cap, and >=~4 tiles for large slabs."""
    cap = 512 if _is_older_gen() else 1024
    total_bytes = rows * lanes * itemsize
    if rows <= cap and total_bytes <= (4 << 20):
        # Small slab: one full-row tile; splitting only adds grid-step overhead.
        return rows
    tm = min(rows, cap)
    # Guarantee at least ~4 row-tiles so DMA/compute overlap and v7x 2-TC
    # sharding engage (a (1,) grid is fully serialized on one core).
    quarter = (rows // 4) // pack * pack
    if quarter >= pack:
        tm = min(tm, quarter)
    tm = max(pack, (tm // pack) * pack)
    return min(tm, rows)


def _trunc_pallas_impl(x):
    n = x.shape[0]
    total = math.prod(x.shape)
    pack = _sublane_pack(x.dtype)
    rows, lanes = _pack_shape(total, pack)
    itemsize = jnp.dtype(x.dtype).itemsize
    tm = _choose_tm(rows, lanes, itemsize, pack)

    x2d = x.reshape(rows, lanes)  # metadata-only repack of the flattened data

    # 1-D grid: tn == lanes always (each tile = one contiguous HBM run).
    grid = (pl.cdiv(rows, tm),)

    y2d = pl.pallas_call(
        _trunc_kernel,
        out_shape=jax.ShapeDtypeStruct((rows, lanes), x.dtype),
        grid=grid,
        in_specs=[pl.BlockSpec((tm, lanes), lambda i: (i, 0))],
        out_specs=pl.BlockSpec((tm, lanes), lambda i: (i, 0)),
        input_output_aliases={0: 0},  # elementwise: safe to write in place
        compiler_params=pltpu.CompilerParams(
            dimension_semantics=("parallel",),
            vmem_limit_bytes=_vmem_limit_bytes(),
        ),
    )(x2d)

    return y2d.reshape(n, -1)


# Donated variant: makes input_output_aliases a real in-place update (no
# defensive copy of the input buffer). Non-donated variant kept for callers
# that still need x afterwards.
_trunc_pallas_donated = jax.jit(_trunc_pallas_impl, donate_argnums=(0,))
_trunc_pallas = jax.jit(_trunc_pallas_impl)


def trunc_flatten(x, *, force_pallas=False, donate=True):
    """Equivalent of torch.flatten(torch.trunc(x), 1, -1)."""
    n = x.shape[0]
    flat = math.prod(x.shape[1:]) if x.ndim > 1 else 1
    total = n * flat
    pack = _sublane_pack(x.dtype)
    packed = _pack_shape(total, pack)
    small = total * jnp.dtype(x.dtype).itemsize < (4 << 20)  # < 4 MiB

    # Tiny or irregular inputs: a custom call + 1-2 grid steps cannot beat an
    # XLA-fused trunc; let XLA fuse it with producers/consumers instead.
    if packed is None or (small and not force_pallas):
        return jnp.trunc(x).reshape(n, flat)

    fn = _trunc_pallas_donated if donate else _trunc_pallas
    return fn(x)


if __name__ == "__main__":
    key = jax.random.PRNGKey(0)
    # Small shape consistent with the module: batch=2, channels=4, spatial=16.
    x = jax.random.normal(key, (2, 4, 16, 16), dtype=jnp.float32) * 5.0

    # Reference computed BEFORE the kernel call (x is donated into the kernel).
    ref = jnp.trunc(x).reshape(2, -1)
    ref = jax.block_until_ready(ref)

    # Force the Pallas path so the kernel itself is exercised even at toy size.
    out = trunc_flatten(x, force_pallas=True, donate=True)
    out = jax.block_until_ready(out)

    assert out.shape == (2, 4 * 16 * 16), out.shape
    assert jnp.allclose(out, ref), "mismatch vs reference"

    print("KERNEL_OK")
</pallas_src>

<mosaic_0001>
module attributes {stable_mosaic.version = 11 : i64} {
  func.func @_trunc_kernel(%arg0: i32, %arg1: memref<8x256xf32, #tpu.memory_space<vmem>>, %arg2: memref<8x256xf32, #tpu.memory_space<vmem>>) attributes {dimension_semantics = [#tpu.dimension_semantics<parallel>], iteration_bounds = array<i64: 1>, scalar_prefetch = 0 : i64, scratch_operands = 0 : i64, tpu.core_type = #tpu.core_type<tc>, window_params = [{transform_indices = @transform_0, window_bounds = array<i64: 8, 256>}, {transform_indices = @transform_1, window_bounds = array<i64: 8, 256>}]} {
    %c0 = arith.constant 0 : index
    %c0_0 = arith.constant 0 : index
    %0 = vector.load %arg1[%c0, %c0_0] : memref<8x256xf32, #tpu.memory_space<vmem>>, vector<8x256xf32>
    %cst = arith.constant 0.000000e+00 : f32
    %1 = vector.broadcast %cst : f32 to vector<8x256xf32>
    %2 = arith.cmpf olt, %0, %1 : vector<8x256xf32>
    %3 = math.ceil %0 : vector<8x256xf32>
    %4 = math.floor %0 : vector<8x256xf32>
    %5 = arith.select %2, %3, %4 : vector<8x256xi1>, vector<8x256xf32>
    %c0_1 = arith.constant 0 : index
    %c0_2 = arith.constant 0 : index
    %6 = vector.load %arg2[%c0_1, %c0_2] : memref<8x256xf32, #tpu.memory_space<vmem>>, vector<8x256xf32>
    tpu.vector_store %arg2[%c0_1, %c0_2], %5 {strides = array<i32>} : memref<8x256xf32, #tpu.memory_space<vmem>>, vector<8x256xf32>,
    return
  }
  func.func @transform_0(%arg0: i32) -> (i32, i32) {
    %c0_i32 = arith.constant 0 : i32
    %c0_i32_0 = arith.constant 0 : i32
    return %arg0, %c0_i32 : i32, i32
  }
  func.func @transform_1(%arg0: i32) -> (i32, i32) {
    %c0_i32 = arith.constant 0 : i32
    %c0_i32_0 = arith.constant 0 : i32
    return %arg0, %c0_i32 : i32, i32
  }
}

</mosaic_0001>

<llo_original>
// kernel: _trunc_pallas_impl.1
$region0: #{_trunc_pallas_impl.1}
  #allocation0 [shape = 'u32[]', space=smem, size = 0x4, offset = 0x4, fixed_abs, tag = 'smem constant byte address 0x4 - core index']
  #allocation1 [shape = 'u32[72,128]{1,0:T(1,128)}', space=vmem, size = 0x9000, scoped, tag = 'internal scratch']
  %s0 = inlined_call_operand.vmem [shape: f32[8,256], index: 0, kind: input, shape index: {}, may-alias: {0,1}]
  %s1 = inlined_call_operand.vmem [shape: f32[8,256], index: 1, kind: output, shape index: {}, may-alias: {0,1}]
  %s2 = sld [smem:[#allocation0]]
  $region14: #{_trunc_pallas_impl.1} parent=0
    _
  %s4 = ssub.s32 1, %s2
  %s5 = scalar_select 0, %s4, %s2
  // Predicated region
  $region2: #{_trunc_pallas_impl.1} parent=0 // pred_check
    _
  $region3: #{_trunc_pallas_impl.1} parent=0 // pred_check_branch
    %7 = sbr.rel (0) target = $region5
  $region4: #{_trunc_pallas_impl.1} parent=0 // pred_region
    _
  $region5: #{_trunc_pallas_impl.1} parent=0 // pred_fallthru
    _
  %v8 = vld [vmem:[%s0] sm:$0xff]
  %v9 = vld [vmem:[%s0 + $0x8] sm:$0xff]
  %vm10 = vcmp.lt.f32.partialorder %v8, 0.0
  %vm11 = vcmp.lt.f32.partialorder %v9, 0.0
  %v12 = vceil.f32 %v8
  %v13 = vceil.f32 %v9
  %v14 = vfloor.f32 %v8
  %v15 = vfloor.f32 %v9
  %v16 = vsel %vm10, %v12, %v14
  %v17 = vsel %vm11, %v13, %v15
  %18 = vst [vmem:[%s1] sm:$0xff] %v16
  %19 = vst [vmem:[%s1 + $0x8] sm:$0xff] %v17
  // Predicated region
  $region6: #{_trunc_pallas_impl.1} parent=0 // pred_check
    _
  $region7: #{_trunc_pallas_impl.1} parent=0 // pred_check_branch
    %21 = sbr.rel (0) target = $region9
  $region8: #{_trunc_pallas_impl.1} parent=0 // pred_region
    _
  $region9: #{_trunc_pallas_impl.1} parent=0 // pred_fallthru
    _
  // Predicated region
  $region10: #{_trunc_pallas_impl.1} parent=0 // pred_check
    _
  $region11: #{_trunc_pallas_impl.1} parent=0 // pred_check_branch
    %23 = sbr.rel (0) target = $region13
  $region12: #{_trunc_pallas_impl.1} parent=0 // pred_region
    _
  $region13: #{_trunc_pallas_impl.1} parent=0 // pred_fallthru
    _

</llo_original>
